<compile_context>
chip_gen: v5e
topology: v5e:2x2
jax: 0.10.0
libtpu: 0.0.40
codegen_flags: <defaults>
</compile_context>

<pallas_src>
import functools
import math

import jax
import jax.numpy as jnp
from jax.experimental import pallas as pl
from jax.experimental.pallas import tpu as pltpu

LEAKY_RELU_ALPHA = 0.1
FILTERS = ((3, 16), (3, 32), (3, 32), (3, 32), (3, 32))  # num_levels = 5

# Spatial rows per block (multiple of 8).  Worst-case f32 VMEM per step:
# taps 1024*384*4 ~= 1.5 MiB + out 1024*128*4 = 0.5 MiB (+ tiny weights),
# x2 double-buffering ~= 4 MiB -- fits v5e's 16 MiB default scoped VMEM and
# leaves ample room on v7x (64 MiB physical).
TILE_HW_MAX = 1024


# ---------------------------------------------------------------------------
# Pallas kernel: fused conv3x3 (as one matmul) + bias + LeakyReLU per tile.
# ---------------------------------------------------------------------------
def _conv_lrelu_kernel(t_ref, w_ref, b_ref, o_ref, *, alpha):
    # t_ref: (TILE_HW, K)  im2col taps, K = kh*kw*Cin (taps folded into K)
    # w_ref: (K, Cout)
    # b_ref: (1, Cout)
    # o_ref: (TILE_HW, Cout)
    acc = jnp.dot(t_ref[...], w_ref[...], preferred_element_type=jnp.float32)
    acc = acc + b_ref[...].astype(jnp.float32)
    out = jnp.where(acc >= 0.0, acc, alpha * acc)  # LeakyReLU
    o_ref[...] = out.astype(o_ref.dtype)


# ---------------------------------------------------------------------------
# Conv wrapper: XLA glue builds lane-dense taps; Pallas runs the hot path.
# ---------------------------------------------------------------------------
def conv2d_lrelu(x, w, b, stride, alpha=LEAKY_RELU_ALPHA, pad_value=0.0):
    """Fused ConstantPad2d((1,1,1,1), pad_value) -> Conv2d(3x3, stride) -> LeakyReLU.

    x: (N, H, W, Cin) NHWC.  w: (kh, kw, Cin, Cout) HWIO.  b: (Cout,).
    """
    n, _, _, cin = x.shape
    kh, kw, _, cout = w.shape
    if kh == 3:  # 3x3 convs are preceded by a 1-pixel constant pad
        x = jnp.pad(x, ((0, 0), (1, 1), (1, 1), (0, 0)),
                    constant_values=pad_value)
    hp, wp = x.shape[1], x.shape[2]
    ho = (hp - kh) // stride + 1
    wo = (wp - kw) // stride + 1
    hw = ho * wo
    k_dim = kh * kw * cin

    # Glue (XLA): lane-dense im2col -- shifted/strided slices concatenated
    # along the channel axis so the kernel sees a single K = kh*kw*Cin
    # contraction dimension (one MXU dot per tile instead of 9 tiny ones).
    # TODO(synk): form taps in-kernel from a haloed row band (manual DMA with
    # memory_space=pl.ANY) to eliminate the remaining im2col materialization.
    taps = []
    for i in range(kh):
        for j in range(kw):
            taps.append(jax.lax.slice(
                x,
                (0, i, j, 0),
                (n, i + stride * (ho - 1) + 1, j + stride * (wo - 1) + 1, cin),
                (1, stride, stride, 1)))
    taps = jnp.concatenate(taps, axis=-1).reshape(n, hw, k_dim)
    w2 = w.reshape(k_dim, cout)
    b2 = b.reshape(1, cout)

    # Spatial tiling: TILE_HW rows per block (multiple of 8), or the whole
    # extent when small (deep pyramid levels).  Partial tail blocks are
    # handled by Pallas' masked writes.
    tile_hw = hw if hw <= TILE_HW_MAX else TILE_HW_MAX
    grid = (n, pl.cdiv(hw, tile_hw))

    out = pl.pallas_call(
        functools.partial(_conv_lrelu_kernel, alpha=alpha),
        out_shape=jax.ShapeDtypeStruct((n, hw, cout), x.dtype),
        grid=grid,
        in_specs=[
            pl.BlockSpec((None, tile_hw, k_dim), lambda m, t: (m, t, 0)),
            pl.BlockSpec((k_dim, cout), lambda m, t: (0, 0)),
            pl.BlockSpec((1, cout), lambda m, t: (0, 0)),
        ],
        out_specs=pl.BlockSpec((None, tile_hw, cout), lambda m, t: (m, t, 0)),
        compiler_params=pltpu.CompilerParams(
            dimension_semantics=("parallel", "parallel"),
            vmem_limit_bytes=32 * 1024 * 1024),
    )(taps, w2, b2)
    return out.reshape(n, ho, wo, cout)


# ---------------------------------------------------------------------------
# Parameter init (deterministic, PyTorch Conv2d default-style uniform init)
# ---------------------------------------------------------------------------
def init_params(key, channel_multiplier=1.0):
    params = []
    in_c = 3
    for _level, (num_layers, num_filters) in enumerate(FILTERS):
        group = []
        out_c = int(num_filters * channel_multiplier)
        for i in range(num_layers):
            stride = 2 if i == 0 else 1  # pyramid_resolution='half'
            k = 3                        # level1_num_1x1 = 0 -> all 3x3 convs
            key, wk, bk = jax.random.split(key, 3)
            bound = 1.0 / math.sqrt(in_c * k * k)
            w = jax.random.uniform(wk, (k, k, in_c, out_c), jnp.float32,
                                   -bound, bound)
            b = jax.random.uniform(bk, (out_c,), jnp.float32, -bound, bound)
            group.append((w, b, stride))
            in_c = out_c
        params.append(group)
    return params


# ---------------------------------------------------------------------------
# Forward pass
# ---------------------------------------------------------------------------
def pwc_feature_pyramid(x_nchw, params, split_features_by_sample=False,
                        use_bfloat16=False):
    """x_nchw: (N, 3, H, W), like the PyTorch module's input."""
    dtype = jnp.bfloat16 if use_bfloat16 else jnp.float32
    x = jnp.transpose(x_nchw, (0, 2, 3, 1)).astype(dtype)  # -> NHWC

    # TODO(synk): fuse all convs of the tiny deep levels (hw <= 64) into one
    # pallas_call with VMEM-resident intermediates to cut launch/HBM overhead.
    features = []
    first_conv = True
    for group in params:
        for (wgt, b, stride) in group:
            wgt = wgt.astype(dtype)
            b = b.astype(dtype)
            if first_conv:
                # Fold x*2-1 into the first conv exactly:
                #   conv(pad_0(2x-1)) == conv_{2w}(pad_{0.5}(x)) + (b - sum(w))
                # (padded taps: 2*w*0.5 - w == 0, matching the zero pad).
                b = b - jnp.sum(wgt, axis=(0, 1, 2))
                wgt = wgt * 2.0
                pad_value = 0.5
                first_conv = False
            else:
                pad_value = 0.0
            x = conv2d_lrelu(x, wgt, b, stride, pad_value=pad_value)
        # The conv chain keeps consuming NHWC; only the returned feature list
        # is permuted back to NCHW to match the PyTorch module's outputs.
        features.append(jnp.transpose(x, (0, 3, 1, 2)))

    if split_features_by_sample:
        nb = features[0].shape[0]
        features = [[f[i:i + 1] for f in features] for i in range(nb)]
    return features


# ---------------------------------------------------------------------------
# Pure-JAX reference of the PyTorch forward (for numerical validation)
# ---------------------------------------------------------------------------
def _reference_pyramid(x_nchw, params):
    x = jnp.transpose(x_nchw, (0, 2, 3, 1)).astype(jnp.float32)
    x = x * 2.0 - 1.0
    feats = []
    for group in params:
        for (w, b, stride) in group:
            if w.shape[0] == 3:
                x = jnp.pad(x, ((0, 0), (1, 1), (1, 1), (0, 0)))
            x = jax.lax.conv_general_dilated(
                x, w, window_strides=(stride, stride), padding="VALID",
                dimension_numbers=("NHWC", "HWIO", "NHWC"),
                precision=jax.lax.Precision.HIGHEST)
            x = x + b
            x = jnp.where(x >= 0.0, x, LEAKY_RELU_ALPHA * x)
        feats.append(jnp.transpose(x, (0, 3, 1, 2)))
    return feats


# ---------------------------------------------------------------------------
if __name__ == "__main__":
    key = jax.random.PRNGKey(0)
    pkey, xkey = jax.random.split(key)
    params = init_params(pkey)

    # Small deterministic input: batch=2, RGB, 16x16 (NCHW like PyTorch).
    x = jax.random.uniform(xkey, (2, 3, 16, 16), dtype=jnp.float32)

    feats = pwc_feature_pyramid(x, params)
    feats = jax.block_until_ready(feats)

    expected = [(2, 16, 8, 8), (2, 32, 4, 4), (2, 32, 2, 2),
                (2, 32, 1, 1), (2, 32, 1, 1)]
    got = [tuple(f.shape) for f in feats]
    assert got == expected, f"unexpected pyramid shapes: {got}"
    assert all(f.dtype == jnp.float32 for f in feats)

    # Numerical check against the pure-JAX reference (includes the folded
    # preprocess + pad-0.5 trick).
    refs = _reference_pyramid(x, params)
    for lvl, (a, r) in enumerate(zip(feats, refs)):
        err = float(jnp.max(jnp.abs(a - r)))
        assert err < 1e-2, f"level {lvl} max abs err {err}"

    # Exercise split_features_by_sample for API parity.
    per_sample = pwc_feature_pyramid(x, params, split_features_by_sample=True)
    assert len(per_sample) == 2 and per_sample[0][0].shape == (1, 16, 8, 8)

    print("KERNEL_OK")
</pallas_src>

<mosaic_0001>
module attributes {stable_mosaic.version = 11 : i64} {
  func.func @_conv_lrelu_kernel(%arg0: i32, %arg1: i32, %arg2: memref<1x64x27xf32, #tpu.memory_space<vmem>>, %arg3: memref<27x16xf32, #tpu.memory_space<vmem>>, %arg4: memref<1x16xf32, #tpu.memory_space<vmem>>, %arg5: memref<1x64x16xf32, #tpu.memory_space<vmem>>) attributes {dimension_semantics = [#tpu.dimension_semantics<parallel>, #tpu.dimension_semantics<parallel>], iteration_bounds = array<i64: 2, 1>, scalar_prefetch = 0 : i64, scratch_operands = 0 : i64, tpu.core_type = #tpu.core_type<tc>, window_params = [{transform_indices = @transform_0, window_bounds = array<i64: 1, 64, 27>}, {pipeline_mode = #tpu.pipeline_mode<synchronous>, transform_indices = @transform_1, window_bounds = array<i64: 27, 16>}, {pipeline_mode = #tpu.pipeline_mode<synchronous>, transform_indices = @transform_2, window_bounds = array<i64: 1, 16>}, {transform_indices = @transform_3, window_bounds = array<i64: 1, 64, 16>}]} {
    %c0 = arith.constant 0 : index
    %c0_0 = arith.constant 0 : index
    %c0_1 = arith.constant 0 : index
    %0 = vector.load %arg2[%c0, %c0_0, %c0_1] : memref<1x64x27xf32, #tpu.memory_space<vmem>>, vector<1x64x27xf32>
    %1 = vector.shape_cast %0 : vector<1x64x27xf32> to vector<64x27xf32>
    %c0_2 = arith.constant 0 : index
    %c0_3 = arith.constant 0 : index
    %2 = vector.load %arg3[%c0_2, %c0_3] : memref<27x16xf32, #tpu.memory_space<vmem>>, vector<27x16xf32>
    %cst = arith.constant dense<0.000000e+00> : vector<64x16xf32>
    %3 = tpu.matmul %1, %2, %cst {dimension_numbers = #tpu.dot_dimension_numbers<[1], [0], [0], [1], [0, 0, 1, 1], [], []>} : vector<64x27xf32>, vector<27x16xf32>, vector<64x16xf32> -> vector<64x16xf32>
    %c0_4 = arith.constant 0 : index
    %c0_5 = arith.constant 0 : index
    %4 = vector.load %arg4[%c0_4, %c0_5] : memref<1x16xf32, #tpu.memory_space<vmem>>, vector<1x16xf32>
    %5 = vector.broadcast %4 : vector<1x16xf32> to vector<64x16xf32>
    %6 = arith.addf %3, %5 : vector<64x16xf32>
    %cst_6 = arith.constant 0.000000e+00 : f32
    %7 = vector.broadcast %cst_6 : f32 to vector<64x16xf32>
    %8 = arith.cmpf oge, %6, %7 : vector<64x16xf32>
    %cst_7 = arith.constant 1.000000e-01 : f32
    %9 = vector.broadcast %cst_7 : f32 to vector<64x16xf32>
    %10 = arith.mulf %9, %6 : vector<64x16xf32>
    %11 = arith.select %8, %6, %10 : vector<64x16xi1>, vector<64x16xf32>
    %c0_8 = arith.constant 0 : index
    %c0_9 = arith.constant 0 : index
    %c0_10 = arith.constant 0 : index
    %12 = vector.load %arg5[%c0_8, %c0_9, %c0_10] : memref<1x64x16xf32, #tpu.memory_space<vmem>>, vector<1x64x16xf32>
    %13 = vector.shape_cast %12 : vector<1x64x16xf32> to vector<64x16xf32>
    %14 = vector.shape_cast %11 : vector<64x16xf32> to vector<1x64x16xf32>
    tpu.vector_store %arg5[%c0_8, %c0_9, %c0_10], %14 {strides = array<i32>} : memref<1x64x16xf32, #tpu.memory_space<vmem>>, vector<1x64x16xf32>,
    return
  }
  func.func @transform_0(%arg0: i32, %arg1: i32) -> (i32, i32, i32) {
    %c0_i32 = arith.constant 0 : i32
    %c0_i32_0 = arith.constant 0 : i32
    return %arg0, %arg1, %c0_i32 : i32, i32, i32
  }
  func.func @transform_1(%arg0: i32, %arg1: i32) -> (i32, i32) {
    %c0_i32 = arith.constant 0 : i32
    %c0_i32_0 = arith.constant 0 : i32
    %c0_i32_1 = arith.constant 0 : i32
    return %c0_i32, %c0_i32_0 : i32, i32
  }
  func.func @transform_2(%arg0: i32, %arg1: i32) -> (i32, i32) {
    %c0_i32 = arith.constant 0 : i32
    %c0_i32_0 = arith.constant 0 : i32
    %c0_i32_1 = arith.constant 0 : i32
    return %c0_i32, %c0_i32_0 : i32, i32
  }
  func.func @transform_3(%arg0: i32, %arg1: i32) -> (i32, i32, i32) {
    %c0_i32 = arith.constant 0 : i32
    %c0_i32_0 = arith.constant 0 : i32
    return %arg0, %arg1, %c0_i32 : i32, i32, i32
  }
}

</mosaic_0001>

<llo_original>
// kernel: tpu_custom_call.1
$region0: #{tpu_custom_call.1}
  #allocation0 [shape = 'u32[]', space=smem, size = 0x4, offset = 0x4, fixed_abs, tag = 'smem constant byte address 0x4 - core index']
  #allocation1 [shape = 'u32[72,128]{1,0:T(1,128)}', space=vmem, size = 0x9000, scoped, tag = 'internal scratch']
  %s0 = inlined_call_operand.vmem [shape: f32[2,64,27], index: 0, kind: input, shape index: {}]
  %s1 = inlined_call_operand.vmem [shape: f32[27,16], index: 1, kind: input, shape index: {}]
  %s2 = inlined_call_operand.vmem [shape: f32[1,16], index: 2, kind: input, shape index: {}]
  %s3 = inlined_call_operand.vmem [shape: f32[2,64,16], index: 3, kind: output, shape index: {}]
  %s4 = sld [smem:[#allocation0]]
  $region45: #{tpu_custom_call.1} parent=0
    _
  %s6 = ssub.s32 1, %s4
  %s7 = scalar_select 0, %s6, %s4
  loop: start=0, step=1, limit=4
  $region2: #{tpu_custom_call.1} parent=0 // loop_pre_header
    _
  $region3: #{tpu_custom_call.1} parent=0 // loop_header
    %s9 = sphi 0, %s13
    %p10 = scmp.ge.s32.totalorder %s9, 4
    %s16 = sphi 0, %s28
    %s17 = sphi 0, %s24
    %s18 = sphi 0, %s16
    %s19 = sphi 0, %s17
    %s20 = sphi 0, %s18
    %s21 = sphi 0, %s19
    %s33 = sphi 0, %s35
    %s36 = sphi 0, %s33
    %s37 = sphi 0, %s36
    %s53 = sphi 0, %s37
    %s57 = sphi 0, %s57
    %s59 = sphi 0, %s57
    %s60 = sphi 0, %s59
    %s74 = sphi 0, %s60
    %s78 = sphi 0, %s78
    %s80 = sphi 0, %s78
    %s81 = sphi 0, %s80
    %s95 = sphi 0, %s81
    %s103 = sphi 0, %s105
    %s106 = sphi 0, %s103
    %s107 = sphi 0, %s106
    %s123 = sphi 0, %s107
  $region4: #{tpu_custom_call.1} parent=0 // loop_header_branch
    %12 = sbr.rel (%p10) target = $region8
  $region5: #{tpu_custom_call.1} parent=0 // loop_body
    %s14 = ssub.s32 %s9, 1
    %s15 = ssub.s32 %s9, 2
    %s22 = sadd.s32 1, %s17
    %p23 = scmp.ge.s32.totalorder %s22, 1
    %s24 = scalar_select %p23, 0, %s22
    %s25 = sadd.s32 1, %s16
    %s26 = scalar_select %p23, %s25, %s16
    %p27 = scmp.ge.s32.totalorder %s26, 2
    %s28 = scalar_select %p27, 0, %s26
    %s29 = ssub.s32 %s16, %s28
    %s30 = ssub.s32 %s17, %s24
    %s31 = sor.u32 %s29, %s30
    %p32 = scmp.eq.s32.totalorder %s31, 0
    %s34 = sadd.s32 %s33, 1
    %s35 = scalar_select %p32, %s33, %s34
    %p38 = pneg %p32
    %p39 = scmp.eq.s32.totalorder %s9, 1
    %p40 = por %p38, %p39
    %p41 = scmp.ne.s32.totalorder %s33, %s36
    %p42 = scmp.eq.s32.totalorder %s9, 0
    %p43 = por %p41, %p42
    %p44 = scmp.ne.s32.totalorder %s33, %s36
    %p45 = scmp.eq.s32.totalorder %s14, 1
    %p46 = por %p44, %p45
    %p47 = scmp.ne.s32.totalorder %s36, %s37
    %p48 = scmp.eq.s32.totalorder %s14, 0
    %p49 = por %p47, %p48
    %p50 = scmp.ne.s32.totalorder %s36, %s37
    %p51 = scmp.eq.s32.totalorder %s15, 1
    %p52 = por %p50, %p51
    %p54 = scmp.ne.s32.totalorder %s37, %s53
    %p55 = scmp.eq.s32.totalorder %s15, 0
    %p56 = por %p54, %p55
    %s58 = sadd.s32 %s57, 1
    %p61 = scmp.eq.s32.totalorder %s9, 1
    %p62 = scmp.ne.s32.totalorder %s57, %s59
    %p63 = scmp.eq.s32.totalorder %s9, 0
    %p64 = por %p62, %p63
    %p65 = scmp.ne.s32.totalorder %s57, %s59
    %p66 = scmp.eq.s32.totalorder %s14, 1
    %p67 = por %p65, %p66
    %p68 = scmp.ne.s32.totalorder %s59, %s60
    %p69 = scmp.eq.s32.totalorder %s14, 0
    %p70 = por %p68, %p69
    %p71 = scmp.ne.s32.totalorder %s59, %s60
    %p72 = scmp.eq.s32.totalorder %s15, 1
    %p73 = por %p71, %p72
    %p75 = scmp.ne.s32.totalorder %s60, %s74
    %p76 = scmp.eq.s32.totalorder %s15, 0
    %p77 = por %p75, %p76
    %s79 = sadd.s32 %s78, 1
    %p82 = scmp.eq.s32.totalorder %s9, 1
    %p83 = scmp.ne.s32.totalorder %s78, %s80
    %p84 = scmp.eq.s32.totalorder %s9, 0
    %p85 = por %p83, %p84
    %p86 = scmp.ne.s32.totalorder %s78, %s80
    %p87 = scmp.eq.s32.totalorder %s14, 1
    %p88 = por %p86, %p87
    %p89 = scmp.ne.s32.totalorder %s80, %s81
    %p90 = scmp.eq.s32.totalorder %s14, 0
    %p91 = por %p89, %p90
    %p92 = scmp.ne.s32.totalorder %s80, %s81
    %p93 = scmp.eq.s32.totalorder %s15, 1
    %p94 = por %p92, %p93
    %p96 = scmp.ne.s32.totalorder %s81, %s95
    %p97 = scmp.eq.s32.totalorder %s15, 0
    %p98 = por %p96, %p97
    %s99 = ssub.s32 %s16, %s28
    %s100 = ssub.s32 %s17, %s24
    %s101 = sor.u32 %s99, %s100
    %p102 = scmp.eq.s32.totalorder %s101, 0
    %s104 = sadd.s32 %s103, 1
    %s105 = scalar_select %p102, %s103, %s104
    %p108 = pneg %p102
    %p109 = scmp.eq.s32.totalorder %s9, 1
    %p110 = por %p108, %p109
    %p111 = scmp.ne.s32.totalorder %s103, %s106
    %p112 = scmp.eq.s32.totalorder %s9, 0
    %p113 = por %p111, %p112
    %p114 = scmp.ne.s32.totalorder %s103, %s106
    %p115 = scmp.eq.s32.totalorder %s14, 1
    %p116 = por %p114, %p115
    %p117 = scmp.ne.s32.totalorder %s106, %s107
    %p118 = scmp.eq.s32.totalorder %s14, 0
    %p119 = por %p117, %p118
    %p120 = scmp.ne.s32.totalorder %s106, %s107
    %p121 = scmp.eq.s32.totalorder %s15, 1
    %p122 = por %p120, %p121
    %p124 = scmp.ne.s32.totalorder %s107, %s123
    %p125 = scmp.eq.s32.totalorder %s15, 0
    %p126 = por %p124, %p125
    %p127 = scmp.le.s32.totalorder 1, %s9
    %p128 = scmp.lt.s32.totalorder %s9, 3
    %p129 = pnand %p127, %p128
    %p130 = pneg %p129
    // Predicated region
    $region9: #{tpu_custom_call.1} parent=5 // pred_check
      _
    $region10: #{tpu_custom_call.1} parent=5 // pred_check_branch
      %132 = sbr.rel (%p129) target = $region12
    $region11: #{tpu_custom_call.1} parent=5 // pred_region
      %s133 = ssub.s32 %s9, 1
      // Predicated region
      $region13: #{tpu_custom_call.1} parent=11 // pred_check
        %p134 = pneg %p70
      $region14: #{tpu_custom_call.1} parent=11 // pred_check_branch
        %136 = sbr.rel (%p134) target = $region16
      $region15: #{tpu_custom_call.1} parent=11 // pred_region
        _
      $region16: #{tpu_custom_call.1} parent=11 // pred_fallthru
        _
      // Predicated region
      $region17: #{tpu_custom_call.1} parent=11 // pred_check
        %p137 = pneg %p91
      $region18: #{tpu_custom_call.1} parent=11 // pred_check_branch
        %139 = sbr.rel (%p137) target = $region20
      $region19: #{tpu_custom_call.1} parent=11 // pred_region
        _
      $region20: #{tpu_custom_call.1} parent=11 // pred_fallthru
        _
    $region12: #{tpu_custom_call.1} parent=5 // pred_fallthru
      _
    %p140 = scmp.lt.s32.totalorder %s9, 2
    // Predicated region
    $region21: #{tpu_custom_call.1} parent=5 // pred_check
      %p141 = pneg %p140
    $region22: #{tpu_custom_call.1} parent=5 // pred_check_branch
      %143 = sbr.rel (%p141) target = $region24
    $region23: #{tpu_custom_call.1} parent=5 // pred_region
      // Predicated region
      $region25: #{tpu_custom_call.1} parent=23 // pred_check
        %p144 = pneg %p43
      $region26: #{tpu_custom_call.1} parent=23 // pred_check_branch
        %146 = sbr.rel (%p144) target = $region28
      $region27: #{tpu_custom_call.1} parent=23 // pred_region
        %s147 = smul.u32 8, %s17
        %p148 = scmp.lt.s32.totalorder %s16, 1
        %s149 = scalar_select %p148, %s16, 1
        %p150 = scmp.lt.s32.totalorder %s147, 7
        %s151 = scalar_select %p150, %s147, 7
        %s152 = smul.addr %s149, 8
        %s153 = sadd.s32 %s151, %s152
        %s154 = smul.addr %s153, 8
        %s155 = scalar_lea.vmem %s0, %s154
        %s156 = smul.u32 8, %s17
      $region28: #{tpu_custom_call.1} parent=23 // pred_fallthru
        _
    $region24: #{tpu_custom_call.1} parent=5 // pred_fallthru
      _
    %p157 = scmp.le.s32.totalorder 1, %s9
    %p158 = scmp.lt.s32.totalorder %s9, 3
    %p159 = pnand %p157, %p158
    %p160 = pneg %p159
    // Predicated region
    $region29: #{tpu_custom_call.1} parent=5 // pred_check
      _
    $region30: #{tpu_custom_call.1} parent=5 // pred_check_branch
      %162 = sbr.rel (%p159) target = $region32
    $region31: #{tpu_custom_call.1} parent=5 // pred_region
      %s163 = ssub.s32 %s9, 1
      %s164 = smul.u32 8, %s19
      %p165 = scmp.lt.s32.totalorder %s18, 1
      %s166 = scalar_select %p165, %s18, 1
      %p167 = scmp.lt.s32.totalorder %s164, 7
      %s168 = scalar_select %p167, %s164, 7
      %s169 = smul.addr %s166, 8
      %s170 = sadd.s32 %s168, %s169
      %s171 = smul.addr %s170, 8
      %s172 = scalar_lea.vmem %s0, %s171
      %p173 = pneg %p49
      %p174 = pneg %p46
      %p175 = pneg %p70
      %p176 = pneg %p67
      %p177 = pneg %p91
      %p178 = pneg %p88
      %p179 = pneg %p119
      %p180 = pneg %p116
      %s181 = smul.u32 8, %s19
      %p182 = scmp.lt.s32.totalorder %s18, 1
      %s183 = scalar_select %p182, %s18, 1
      %p184 = scmp.lt.s32.totalorder %s181, 7
      %s185 = scalar_select %p184, %s181, 7
      %s186 = smul.addr %s183, 8
      %s187 = sadd.s32 %s185, %s186
      %s188 = smul.addr %s187, 8
      %s189 = scalar_lea.vmem %s3, %s188
      %s190 = smul.u32 8, %s19
      %p191 = scmp.lt.s32.totalorder %s18, 1
      %s192 = scalar_select %p191, %s18, 1
      %p193 = scmp.lt.s32.totalorder %s190, 7
      %s194 = scalar_select %p193, %s190, 7
      %s195 = smul.addr %s192, 8
      %s196 = sadd.s32 %s194, %s195
      %s197 = smul.addr %s196, 8
      %s198 = scalar_lea.vmem %s0, %s197
      %s199 = smul.u32 8, %s19
      %s200 = smul.u32 8, %s19
      %p201 = scmp.lt.s32.totalorder %s18, 1
      %s202 = scalar_select %p201, %s18, 1
      %p203 = scmp.lt.s32.totalorder %s200, 7
      %s204 = scalar_select %p203, %s200, 7
      %s205 = smul.addr %s202, 8
      %s206 = sadd.s32 %s204, %s205
      %s207 = smul.addr %s206, 8
      %s208 = scalar_lea.vmem %s3, %s207
      %s209 = smul.u32 8, %s19
      %v210 = vld [vmem:[%s198] sm:$0xff]
      %v211 = vld [vmem:[%s198 + $0x8] sm:$0xff]
      %v212 = vld [vmem:[%s198 + $0x10] sm:$0xff]
      %v213 = vld [vmem:[%s198 + $0x18] sm:$0xff]
      %v214 = vld [vmem:[%s198 + $0x20] sm:$0xff]
      %v215 = vld [vmem:[%s198 + $0x28] sm:$0xff]
      %v216 = vld [vmem:[%s198 + $0x30] sm:$0xff]
      %v217 = vld [vmem:[%s198 + $0x38] sm:$0xff]
      %v218 = vld [vmem:[%s1] sm:$0xff]
      %v219 = vld [vmem:[%s1 + $0x8] sm:$0xff]
      %v220 = vld [vmem:[%s1 + $0x10] sm:$0xff]
      %v221 = vld [vmem:[%s1 + $0x18] sm:$0x7]
      %v222 = vld [vmem:[%s2] sm:$0x1]
      %v224 = vperm.slane %v222, 0
      %vm226 = vcmask 220160
      %v228 = vsel %vm226, %v210, 0
      %v231 = vsel %vm226, %v211, 0
      %v234 = vsel %vm226, %v212, 0
      %v237 = vsel %vm226, %v213, 0
      %v240 = vsel %vm226, %v214, 0
      %v243 = vsel %vm226, %v215, 0
      %v246 = vsel %vm226, %v216, 0
      %v249 = vsel %vm226, %v217, 0
      %vm251 = vcmask 1042432
      %v253 = vsel %vm251, %v221, 0
      %255 = vmatpush.msra.mxu0 0.0
      %256 = vmatpush.msra.mxu0 0.0
      %257 = vmatpush.msra.mxu0 0.0
      %258 = vmatpush.msra.mxu0 0.0
      %259 = vmatpush.msra.mxu0 0.0
      %260 = vmatpush.msra.mxu0 0.0
      %261 = vmatpush.msra.mxu0 0.0
      %262 = vmatpush.msra.mxu0 0.0
      %263 = vmatpush.msra.mxu0 0.0
      %264 = vmatpush.msra.mxu0 0.0
      %265 = vmatpush.msra.mxu0 0.0
      %266 = vmatpush.msra.mxu0 0.0
      %267 = vmatpush.msra.mxu0 %v253
      %268 = vmatpush.msra.mxu0 %v220
      %269 = vmatpush.msra.mxu0 %v219
      %270 = vmatpush.msra.mxu0 %v218
      %271 = vmatmul.f32.gmra.mxu0 %v228
      %v272 = vpop.f32.mrf.mxu0
      %v273 = vadd.f32 %v224, %v272
      %274 = vmatmul.f32.gmra.mxu0 %v231
      %v275 = vpop.f32.mrf.mxu0
      %v276 = vadd.f32 %v224, %v275
      %277 = vmatmul.f32.gmra.mxu0 %v234
      %v278 = vpop.f32.mrf.mxu0
      %v279 = vadd.f32 %v224, %v278
      %280 = vmatmul.f32.gmra.mxu0 %v237
      %v281 = vpop.f32.mrf.mxu0
      %v282 = vadd.f32 %v224, %v281
      %283 = vmatmul.f32.gmra.mxu0 %v240
      %v284 = vpop.f32.mrf.mxu0
      %v285 = vadd.f32 %v224, %v284
      %286 = vmatmul.f32.gmra.mxu0 %v243
      %v287 = vpop.f32.mrf.mxu0
      %v288 = vadd.f32 %v224, %v287
      %289 = vmatmul.f32.gmra.mxu0 %v246
      %v290 = vpop.f32.mrf.mxu0
      %v291 = vadd.f32 %v224, %v290
      %292 = vmatmul.f32.gmra.mxu0 %v249
      %v293 = vpop.f32.mrf.mxu0
      %v294 = vadd.f32 %v224, %v293
      %295 = vdwg.mxu0
      %vm296 = vcmp.ge.f32.partialorder %v273, 0.0
      %vm297 = vcmp.ge.f32.partialorder %v276, 0.0
      %vm298 = vcmp.ge.f32.partialorder %v279, 0.0
      %vm299 = vcmp.ge.f32.partialorder %v282, 0.0
      %vm300 = vcmp.ge.f32.partialorder %v285, 0.0
      %vm301 = vcmp.ge.f32.partialorder %v288, 0.0
      %vm302 = vcmp.ge.f32.partialorder %v291, 0.0
      %vm303 = vcmp.ge.f32.partialorder %v294, 0.0
      %v304 = vmul.f32 %v273, 0.1
      %v305 = vmul.f32 %v276, 0.1
      %v306 = vmul.f32 %v279, 0.1
      %v307 = vmul.f32 %v282, 0.1
      %v308 = vmul.f32 %v285, 0.1
      %v309 = vmul.f32 %v288, 0.1
      %v310 = vmul.f32 %v291, 0.1
      %v311 = vmul.f32 %v294, 0.1
      %v312 = vsel %vm296, %v273, %v304
      %v313 = vsel %vm297, %v276, %v305
      %v314 = vsel %vm298, %v279, %v306
      %v315 = vsel %vm299, %v282, %v307
      %v316 = vsel %vm300, %v285, %v308
      %v317 = vsel %vm301, %v288, %v309
      %v318 = vsel %vm302, %v291, %v310
      %v319 = vsel %vm303, %v294, %v311
      %vm320 = vcmask 130048
      %321 = vst.msk [vmem:[%s208] sm:$0xff] %vm320, %v312
      %322 = vst.msk [vmem:[%s208 + $0x8] sm:$0xff] %vm320, %v313
      %323 = vst.msk [vmem:[%s208 + $0x10] sm:$0xff] %vm320, %v314
      %324 = vst.msk [vmem:[%s208 + $0x18] sm:$0xff] %vm320, %v315
      %325 = vst.msk [vmem:[%s208 + $0x20] sm:$0xff] %vm320, %v316
      %326 = vst.msk [vmem:[%s208 + $0x28] sm:$0xff] %vm320, %v317
      %327 = vst.msk [vmem:[%s208 + $0x30] sm:$0xff] %vm320, %v318
      %328 = vst.msk [vmem:[%s208 + $0x38] sm:$0xff] %vm320, %v319
      %s329 = smul.u32 8, %s19
      %p330 = scmp.lt.s32.totalorder %s18, 1
      %s331 = scalar_select %p330, %s18, 1
      %p332 = scmp.lt.s32.totalorder %s329, 7
      %s333 = scalar_select %p332, %s329, 7
      %s334 = smul.addr %s331, 8
      %s335 = sadd.s32 %s333, %s334
      %s336 = smul.addr %s335, 8
      %s337 = scalar_lea.vmem %s3, %s336
      // Predicated region
      $region33: #{tpu_custom_call.1} parent=31 // pred_check
        %p338 = pneg %p116
      $region34: #{tpu_custom_call.1} parent=31 // pred_check_branch
        %340 = sbr.rel (%p338) target = $region36
      $region35: #{tpu_custom_call.1} parent=31 // pred_region
        %s341 = smul.u32 8, %s19
      $region36: #{tpu_custom_call.1} parent=31 // pred_fallthru
        _
    $region32: #{tpu_custom_call.1} parent=5 // pred_fallthru
      _
    %p342 = scmp.le.s32.totalorder 2, %s9
    // Predicated region
    $region37: #{tpu_custom_call.1} parent=5 // pred_check
      %p343 = pneg %p342
    $region38: #{tpu_custom_call.1} parent=5 // pred_check_branch
      %345 = sbr.rel (%p343) target = $region40
    $region39: #{tpu_custom_call.1} parent=5 // pred_region
      %s346 = ssub.s32 %s9, 2
      // Predicated region
      $region41: #{tpu_custom_call.1} parent=39 // pred_check
        %p347 = pneg %p122
      $region42: #{tpu_custom_call.1} parent=39 // pred_check_branch
        %349 = sbr.rel (%p347) target = $region44
      $region43: #{tpu_custom_call.1} parent=39 // pred_region
        %s350 = smul.u32 8, %s21
        %p351 = scmp.lt.s32.totalorder %s20, 1
        %s352 = scalar_select %p351, %s20, 1
        %p353 = scmp.lt.s32.totalorder %s350, 7
        %s354 = scalar_select %p353, %s350, 7
        %s355 = smul.addr %s352, 8
        %s356 = sadd.s32 %s354, %s355
        %s357 = smul.addr %s356, 8
        %s358 = scalar_lea.vmem %s3, %s357
      $region44: #{tpu_custom_call.1} parent=39 // pred_fallthru
        _
    $region40: #{tpu_custom_call.1} parent=5 // pred_fallthru
      _
  $region6: #{tpu_custom_call.1} parent=0 // loop_footer
    %s13 = sadd.s32 1, %s9
  $region7: #{tpu_custom_call.1} parent=0 // loop_footer_branch
    %8 = sbr.rel target = $region3
  $region8: #{tpu_custom_call.1} parent=0 // loop_exit
    _

</llo_original>
